<compile_context>
chip_gen: v6e
topology: v6e:2x2x1
jax: 0.10.0
libtpu: 0.0.40
codegen_flags: <defaults>
</compile_context>

<pallas_src>
import functools

import jax
import jax.numpy as jnp
from jax.experimental import pallas as pl
from jax.experimental.pallas import tpu as pltpu

_NEG_PAD = -1e30  # finite (also representable in bf16); exp(pad - max) -> 0.


def _round_up(a, b):
    return (a + b - 1) // b * b


def _label_smoothing_kernel(x_ref, t_ref, loss_ref, m_sc, l_sc, s_sc, *,
                            confidence, smooth_w, tc, class_rem):
    """Grid = (row_tiles, class_tiles); class axis is the reduction axis."""
    j = pl.program_id(1)

    @pl.when(j == 0)
    def _init():
        m_sc[...] = jnp.full(m_sc.shape, -jnp.inf, dtype=jnp.float32)
        l_sc[...] = jnp.zeros(l_sc.shape, dtype=jnp.float32)
        s_sc[...] = jnp.zeros(s_sc.shape, dtype=jnp.float32)

    x = x_ref[...].astype(jnp.float32)            # (TN, TC)

    # ---- online logsumexp over the class axis.  No masking needed: padded
    # columns hold _NEG_PAD in HBM, so exp(pad - m) underflows to exactly 0.
    m_prev = m_sc[...]
    m_new = jnp.maximum(m_prev, jnp.max(x, axis=-1, keepdims=True))
    alpha = jnp.exp(m_prev - m_new)
    l_sc[...] = alpha * l_sc[...] + jnp.sum(jnp.exp(x - m_new), axis=-1,
                                            keepdims=True)
    m_sc[...] = m_new

    # ---- fused weighted-logit sum:
    #   s = (smoothing/C) * sum(x) + confidence * x[target]
    # Lane-local iota compared against (target - tile_offset): no global class
    # index tile, no materialized weight tile (1 select + 2 reductions).
    lane = jax.lax.broadcasted_iota(jnp.int32, x.shape, 1)
    t_local = t_ref[...] - j * tc                 # (TN, 1) int32
    x_tgt = jnp.sum(jnp.where(lane == t_local, x, 0.0), axis=-1, keepdims=True)

    if class_rem is None:
        # Fast path: C is a multiple of TC -> zero per-element masking.
        s_sc[...] = (s_sc[...] + smooth_w * jnp.sum(x, axis=-1, keepdims=True)
                     + confidence * x_tgt)
    else:
        # Only the last class tile contains padded columns; confine the mask
        # (needed only for the plain sum(x) term) to that tile.
        is_last = j == pl.num_programs(1) - 1

        @pl.when(is_last)
        def _last_tile():
            xz = jnp.where(lane < class_rem, x, 0.0)
            s_sc[...] = (s_sc[...]
                         + smooth_w * jnp.sum(xz, axis=-1, keepdims=True)
                         + confidence * x_tgt)

        @pl.when(jnp.logical_not(is_last))
        def _steady_state():
            s_sc[...] = (s_sc[...]
                         + smooth_w * jnp.sum(x, axis=-1, keepdims=True)
                         + confidence * x_tgt)

    @pl.when(j == pl.num_programs(1) - 1)
    def _finalize():
        lse = m_sc[...] + jnp.log(l_sc[...])
        loss_ref[...] = lse - s_sc[...]


def label_smoothing_loss(x, target, smoothing=0.1, *, tn=256, tc=4096):
    """x: [N, C] float logits (f32 or bf16), target: [N] int ids -> scalar f32."""
    n, c = x.shape
    confidence = 1.0 - smoothing
    smooth_w = smoothing / c
    itemsize = jnp.dtype(x.dtype).itemsize

    # ---- tile sizes --------------------------------------------------------
    # Rows: multiples of 8 (sublanes); keep >= ~4 row tiles when N allows it
    # so both v7x TensorCores (and the pipeline) have work.
    tn = max(8, _round_up(tn, 8))
    tn = min(tn, _round_up(n, 8))
    tn = min(tn, max(8, _round_up(-(-n // 4), 8)))

    # Classes: multiples of 128 (lanes); shrink until double-buffered input
    # plus f32 working set fits a 48 MiB VMEM budget (v7x: 64 MiB physical).
    vmem_budget = 48 * 1024 * 1024
    tc = max(128, _round_up(tc, 128))
    tc = min(tc, _round_up(c, 128))
    while tc > 128 and 2 * tn * tc * (itemsize + 4) + (4 << 20) > vmem_budget:
        tc = max(128, _round_up(tc // 2, 128))

    c_pad = _round_up(c, tc)
    n_pad = _round_up(n, tn)
    n_class_tiles = c_pad // tc
    class_rem = None if c_pad == c else c - (n_class_tiles - 1) * tc

    # ---- pad in HBM only when necessary ------------------------------------
    x_p = x
    if (n_pad, c_pad) != (n, c):
        # Large-negative class padding makes the in-kernel logsumexp mask-free.
        x_p = jnp.pad(x, ((0, n_pad - n), (0, c_pad - c)),
                      constant_values=_NEG_PAD)
    t_p = target.astype(jnp.int32).reshape(n, 1)
    if n_pad != n:
        t_p = jnp.pad(t_p, ((0, n_pad - n), (0, 0)))

    grid = (n_pad // tn, c_pad // tc)

    kernel = functools.partial(
        _label_smoothing_kernel,
        confidence=confidence, smooth_w=smooth_w, tc=tc, class_rem=class_rem)

    vmem_limit = int(min(vmem_budget,
                         max(32 * 1024 * 1024,
                             2 * tn * tc * (itemsize + 4) + (4 << 20))))

    cost = pl.CostEstimate(
        flops=6 * n_pad * c_pad,
        transcendentals=n_pad * c_pad,
        bytes_accessed=n_pad * c_pad * itemsize + 2 * n_pad * 4)

    per_row = pl.pallas_call(
        kernel,
        out_shape=jax.ShapeDtypeStruct((n_pad, 1), jnp.float32),
        grid=grid,
        in_specs=[
            pl.BlockSpec((tn, tc), lambda i, j: (i, j)),
            pl.BlockSpec((tn, 1), lambda i, j: (i, 0)),
        ],
        out_specs=pl.BlockSpec((tn, 1), lambda i, j: (i, 0)),
        scratch_shapes=[
            pltpu.VMEM((tn, 1), jnp.float32),   # running max
            pltpu.VMEM((tn, 1), jnp.float32),   # running sum(exp)
            pltpu.VMEM((tn, 1), jnp.float32),   # running weighted-logit sum
        ],
        compiler_params=pltpu.CompilerParams(
            dimension_semantics=("parallel", "arbitrary"),
            vmem_limit_bytes=vmem_limit,
        ),
        cost_estimate=cost,
    )(x_p, t_p)

    # Final mean over the true (unpadded) rows — tiny, done in JAX.
    return jnp.sum(per_row[:n, 0]) / n


def _reference(x, target, smoothing=0.1):
    confidence = 1.0 - smoothing
    logprobs = jax.nn.log_softmax(x.astype(jnp.float32), axis=-1)
    nll = -jnp.take_along_axis(
        logprobs, target[:, None].astype(jnp.int32), axis=-1)[:, 0]
    smooth = -jnp.mean(logprobs, axis=-1)
    return jnp.mean(confidence * nll + smoothing * smooth)


if __name__ == "__main__":
    key = jax.random.PRNGKey(0)
    kx, kt, kx2, kt2, kx3, kt3 = jax.random.split(key, 6)
    smoothing = 0.1

    # Case 1: small shapes, single tile, class padding (C < 128).
    N, C = 8, 32
    x = jax.random.normal(kx, (N, C), dtype=jnp.float32)
    target = jax.random.randint(kt, (N,), 0, C, dtype=jnp.int32)
    loss = jax.block_until_ready(
        label_smoothing_loss(x, target, smoothing=smoothing))
    ref = _reference(x, target, smoothing=smoothing)
    assert jnp.allclose(loss, ref, atol=1e-5, rtol=1e-5), (loss, ref)

    # Case 2: unaligned shapes, bf16 logits, multi-class-tile grid (exercises
    # the online logsumexp across tiles plus the last-tile-only mask path).
    N2, C2 = 20, 200
    x2 = jax.random.normal(kx2, (N2, C2)).astype(jnp.bfloat16)
    t2 = jax.random.randint(kt2, (N2,), 0, C2, dtype=jnp.int32)
    loss2 = jax.block_until_ready(
        label_smoothing_loss(x2, t2, smoothing=smoothing, tn=8, tc=128))
    ref2 = _reference(x2, t2, smoothing=smoothing)
    assert jnp.allclose(loss2, ref2, atol=1e-4, rtol=1e-4), (loss2, ref2)

    # Case 3: aligned shapes (C % TC == 0, N % TN == 0) -> mask-free fast path,
    # multiple row tiles, no HBM padding copy.
    N3, C3 = 64, 1024
    x3 = jax.random.normal(kx3, (N3, C3), dtype=jnp.float32)
    t3 = jax.random.randint(kt3, (N3,), 0, C3, dtype=jnp.int32)
    loss3 = jax.block_until_ready(
        label_smoothing_loss(x3, t3, smoothing=smoothing))
    ref3 = _reference(x3, t3, smoothing=smoothing)
    assert jnp.allclose(loss3, ref3, atol=1e-5, rtol=1e-5), (loss3, ref3)

    print("KERNEL_OK")
</pallas_src>

<mosaic_0001>
module attributes {stable_mosaic.version = 11 : i64} {
  func.func @_label_smoothing_kernel(%arg0: i32, %arg1: i32, %arg2: memref<8x128xf32, #tpu.memory_space<vmem>>, %arg3: memref<8x1xi32, #tpu.memory_space<vmem>>, %arg4: memref<8x1xf32, #tpu.memory_space<vmem>>, %arg5: memref<8x1xf32, #tpu.memory_space<vmem>>, %arg6: memref<8x1xf32, #tpu.memory_space<vmem>>, %arg7: memref<8x1xf32, #tpu.memory_space<vmem>>) attributes {dimension_semantics = [#tpu.dimension_semantics<parallel>, #tpu.dimension_semantics<arbitrary>], iteration_bounds = array<i64: 1, 1>, scalar_prefetch = 0 : i64, scratch_operands = 3 : i64, tpu.core_type = #tpu.core_type<tc>, window_params = [{transform_indices = @transform_0, window_bounds = array<i64: 8, 128>}, {transform_indices = @transform_1, window_bounds = array<i64: 8, 1>}, {transform_indices = @transform_2, window_bounds = array<i64: 8, 1>}]} {
    %c0_i32 = arith.constant 0 : i32
    %0 = arith.cmpi eq, %arg1, %c0_i32 : i32
    %1 = arith.extui %0 : i1 to i32
    %c0_i32_0 = arith.constant 0 : i32
    %2 = arith.cmpi ne, %1, %c0_i32_0 : i32
    scf.if %2 {
      %cst_20 = arith.constant 0xFF800000 : f32
      %40 = vector.broadcast %cst_20 : f32 to vector<8x1xf32>
      %c0_21 = arith.constant 0 : index
      %c0_22 = arith.constant 0 : index
      %41 = vector.load %arg5[%c0_21, %c0_22] : memref<8x1xf32, #tpu.memory_space<vmem>>, vector<8x1xf32>
      tpu.vector_store %arg5[%c0_21, %c0_22], %40 {strides = array<i32>} : memref<8x1xf32, #tpu.memory_space<vmem>>, vector<8x1xf32>,
      %cst_23 = arith.constant 0.000000e+00 : f32
      %42 = vector.broadcast %cst_23 : f32 to vector<8x1xf32>
      %c0_24 = arith.constant 0 : index
      %c0_25 = arith.constant 0 : index
      %43 = vector.load %arg6[%c0_24, %c0_25] : memref<8x1xf32, #tpu.memory_space<vmem>>, vector<8x1xf32>
      tpu.vector_store %arg6[%c0_24, %c0_25], %42 {strides = array<i32>} : memref<8x1xf32, #tpu.memory_space<vmem>>, vector<8x1xf32>,
      %cst_26 = arith.constant 0.000000e+00 : f32
      %44 = vector.broadcast %cst_26 : f32 to vector<8x1xf32>
      %c0_27 = arith.constant 0 : index
      %c0_28 = arith.constant 0 : index
      %45 = vector.load %arg7[%c0_27, %c0_28] : memref<8x1xf32, #tpu.memory_space<vmem>>, vector<8x1xf32>
      tpu.vector_store %arg7[%c0_27, %c0_28], %44 {strides = array<i32>} : memref<8x1xf32, #tpu.memory_space<vmem>>, vector<8x1xf32>,
    } else {
    }
    %c0 = arith.constant 0 : index
    %c0_1 = arith.constant 0 : index
    %3 = vector.load %arg2[%c0, %c0_1] : memref<8x128xf32, #tpu.memory_space<vmem>>, vector<8x128xf32>
    %c0_2 = arith.constant 0 : index
    %c0_3 = arith.constant 0 : index
    %4 = vector.load %arg5[%c0_2, %c0_3] : memref<8x1xf32, #tpu.memory_space<vmem>>, vector<8x1xf32>
    %cst = arith.constant dense<0xFF800000> : vector<8xf32>
    %5 = vector.multi_reduction <maximumf>, %3, %cst [1] : vector<8x128xf32> to vector<8xf32>
    %6 = vector.shape_cast %5 : vector<8xf32> to vector<8x1xf32>
    %7 = arith.maximumf %4, %6 : vector<8x1xf32>
    %8 = arith.subf %4, %7 : vector<8x1xf32>
    %9 = math.exp %8 : vector<8x1xf32>
    %c0_4 = arith.constant 0 : index
    %c0_5 = arith.constant 0 : index
    %10 = vector.load %arg6[%c0_4, %c0_5] : memref<8x1xf32, #tpu.memory_space<vmem>>, vector<8x1xf32>
    %11 = arith.mulf %9, %10 : vector<8x1xf32>
    %12 = vector.broadcast %7 : vector<8x1xf32> to vector<8x128xf32>
    %13 = arith.subf %3, %12 : vector<8x128xf32>
    %14 = math.exp %13 : vector<8x128xf32>
    %cst_6 = arith.constant dense<0.000000e+00> : vector<8xf32>
    %15 = vector.multi_reduction <add>, %14, %cst_6 [1] : vector<8x128xf32> to vector<8xf32>
    %16 = vector.shape_cast %15 : vector<8xf32> to vector<8x1xf32>
    %17 = arith.addf %11, %16 : vector<8x1xf32>
    %c0_7 = arith.constant 0 : index
    %c0_8 = arith.constant 0 : index
    %18 = vector.load %arg6[%c0_7, %c0_8] : memref<8x1xf32, #tpu.memory_space<vmem>>, vector<8x1xf32>
    tpu.vector_store %arg6[%c0_7, %c0_8], %17 {strides = array<i32>} : memref<8x1xf32, #tpu.memory_space<vmem>>, vector<8x1xf32>,
    %c0_9 = arith.constant 0 : index
    %c0_10 = arith.constant 0 : index
    %19 = vector.load %arg5[%c0_9, %c0_10] : memref<8x1xf32, #tpu.memory_space<vmem>>, vector<8x1xf32>
    tpu.vector_store %arg5[%c0_9, %c0_10], %7 {strides = array<i32>} : memref<8x1xf32, #tpu.memory_space<vmem>>, vector<8x1xf32>,
    %20 = tpu.iota {dimensions = array<i32: 1>} : vector<8x128xi32>
    %c0_11 = arith.constant 0 : index
    %c0_12 = arith.constant 0 : index
    %21 = vector.load %arg3[%c0_11, %c0_12] : memref<8x1xi32, #tpu.memory_space<vmem>>, vector<8x1xi32>
    %c128_i32 = arith.constant 128 : i32
    %22 = arith.muli %arg1, %c128_i32 : i32
    %23 = vector.broadcast %22 : i32 to vector<8x1xi32>
    %24 = arith.subi %21, %23 : vector<8x1xi32>
    %25 = vector.broadcast %24 : vector<8x1xi32> to vector<8x128xi32>
    %26 = arith.cmpi eq, %20, %25 : vector<8x128xi32>
    %cst_13 = arith.constant 0.000000e+00 : f32
    %27 = vector.broadcast %cst_13 : f32 to vector<8x128xf32>
    %28 = arith.select %26, %3, %27 : vector<8x128xi1>, vector<8x128xf32>
    %cst_14 = arith.constant dense<0.000000e+00> : vector<8xf32>
    %29 = vector.multi_reduction <add>, %28, %cst_14 [1] : vector<8x128xf32> to vector<8xf32>
    %30 = vector.shape_cast %29 : vector<8xf32> to vector<8x1xf32>
    %c0_i32_15 = arith.constant 0 : i32
    %31 = arith.cmpi eq, %arg1, %c0_i32_15 : i32
    %32 = arith.extui %31 : i1 to i32
    %c0_i32_16 = arith.constant 0 : i32
    %33 = arith.cmpi ne, %32, %c0_i32_16 : i32
    scf.if %33 {
      %c32_i32 = arith.constant 32 : i32
      %40 = vector.broadcast %c32_i32 : i32 to vector<8x128xi32>
      %41 = arith.cmpi slt, %20, %40 : vector<8x128xi32>
      %cst_20 = arith.constant 0.000000e+00 : f32
      %42 = vector.broadcast %cst_20 : f32 to vector<8x128xf32>
      %43 = arith.select %41, %3, %42 : vector<8x128xi1>, vector<8x128xf32>
      %c0_21 = arith.constant 0 : index
      %c0_22 = arith.constant 0 : index
      %44 = vector.load %arg7[%c0_21, %c0_22] : memref<8x1xf32, #tpu.memory_space<vmem>>, vector<8x1xf32>
      %cst_23 = arith.constant dense<0.000000e+00> : vector<8xf32>
      %45 = vector.multi_reduction <add>, %43, %cst_23 [1] : vector<8x128xf32> to vector<8xf32>
      %46 = vector.shape_cast %45 : vector<8xf32> to vector<8x1xf32>
      %cst_24 = arith.constant 3.125000e-03 : f32
      %47 = vector.broadcast %cst_24 : f32 to vector<8x1xf32>
      %48 = arith.mulf %47, %46 : vector<8x1xf32>
      %49 = arith.addf %44, %48 : vector<8x1xf32>
      %cst_25 = arith.constant 0.899999976 : f32
      %50 = vector.broadcast %cst_25 : f32 to vector<8x1xf32>
      %51 = arith.mulf %50, %30 : vector<8x1xf32>
      %52 = arith.addf %49, %51 : vector<8x1xf32>
      %c0_26 = arith.constant 0 : index
      %c0_27 = arith.constant 0 : index
      %53 = vector.load %arg7[%c0_26, %c0_27] : memref<8x1xf32, #tpu.memory_space<vmem>>, vector<8x1xf32>
      tpu.vector_store %arg7[%c0_26, %c0_27], %52 {strides = array<i32>} : memref<8x1xf32, #tpu.memory_space<vmem>>, vector<8x1xf32>,
    } else {
    }
    %true = arith.constant true
    %34 = arith.xori %31, %true : i1
    %35 = arith.extui %34 : i1 to i32
    %c0_i32_17 = arith.constant 0 : i32
    %36 = arith.cmpi ne, %35, %c0_i32_17 : i32
    scf.if %36 {
      %c0_20 = arith.constant 0 : index
      %c0_21 = arith.constant 0 : index
      %40 = vector.load %arg7[%c0_20, %c0_21] : memref<8x1xf32, #tpu.memory_space<vmem>>, vector<8x1xf32>
      %cst_22 = arith.constant dense<0.000000e+00> : vector<8xf32>
      %41 = vector.multi_reduction <add>, %3, %cst_22 [1] : vector<8x128xf32> to vector<8xf32>
      %42 = vector.shape_cast %41 : vector<8xf32> to vector<8x1xf32>
      %cst_23 = arith.constant 3.125000e-03 : f32
      %43 = vector.broadcast %cst_23 : f32 to vector<8x1xf32>
      %44 = arith.mulf %43, %42 : vector<8x1xf32>
      %45 = arith.addf %40, %44 : vector<8x1xf32>
      %cst_24 = arith.constant 0.899999976 : f32
      %46 = vector.broadcast %cst_24 : f32 to vector<8x1xf32>
      %47 = arith.mulf %46, %30 : vector<8x1xf32>
      %48 = arith.addf %45, %47 : vector<8x1xf32>
      %c0_25 = arith.constant 0 : index
      %c0_26 = arith.constant 0 : index
      %49 = vector.load %arg7[%c0_25, %c0_26] : memref<8x1xf32, #tpu.memory_space<vmem>>, vector<8x1xf32>
      tpu.vector_store %arg7[%c0_25, %c0_26], %48 {strides = array<i32>} : memref<8x1xf32, #tpu.memory_space<vmem>>, vector<8x1xf32>,
    } else {
    }
    %c0_i32_18 = arith.constant 0 : i32
    %37 = arith.cmpi eq, %arg1, %c0_i32_18 : i32
    %38 = arith.extui %37 : i1 to i32
    %c0_i32_19 = arith.constant 0 : i32
    %39 = arith.cmpi ne, %38, %c0_i32_19 : i32
    scf.if %39 {
      %c0_20 = arith.constant 0 : index
      %c0_21 = arith.constant 0 : index
      %40 = vector.load %arg5[%c0_20, %c0_21] : memref<8x1xf32, #tpu.memory_space<vmem>>, vector<8x1xf32>
      %c0_22 = arith.constant 0 : index
      %c0_23 = arith.constant 0 : index
      %41 = vector.load %arg6[%c0_22, %c0_23] : memref<8x1xf32, #tpu.memory_space<vmem>>, vector<8x1xf32>
      %42 = math.log %41 : vector<8x1xf32>
      %43 = arith.addf %40, %42 : vector<8x1xf32>
      %c0_24 = arith.constant 0 : index
      %c0_25 = arith.constant 0 : index
      %44 = vector.load %arg7[%c0_24, %c0_25] : memref<8x1xf32, #tpu.memory_space<vmem>>, vector<8x1xf32>
      %45 = arith.subf %43, %44 : vector<8x1xf32>
      %c0_26 = arith.constant 0 : index
      %c0_27 = arith.constant 0 : index
      %46 = vector.load %arg4[%c0_26, %c0_27] : memref<8x1xf32, #tpu.memory_space<vmem>>, vector<8x1xf32>
      tpu.vector_store %arg4[%c0_26, %c0_27], %45 {strides = array<i32>} : memref<8x1xf32, #tpu.memory_space<vmem>>, vector<8x1xf32>,
    } else {
    }
    return
  }
  func.func @transform_0(%arg0: i32, %arg1: i32) -> (i32, i32) {
    %c0_i32 = arith.constant 0 : i32
    return %arg0, %arg1 : i32, i32
  }
  func.func @transform_1(%arg0: i32, %arg1: i32) -> (i32, i32) {
    %c0_i32 = arith.constant 0 : i32
    %c0_i32_0 = arith.constant 0 : i32
    return %arg0, %c0_i32 : i32, i32
  }
  func.func @transform_2(%arg0: i32, %arg1: i32) -> (i32, i32) {
    %c0_i32 = arith.constant 0 : i32
    %c0_i32_0 = arith.constant 0 : i32
    return %arg0, %c0_i32 : i32, i32
  }
}

</mosaic_0001>

<llo_original>
// kernel: tpu_custom_call.1
$region0: #{tpu_custom_call.1}
  #allocation0 [shape = 'u32[]', space=smem, size = 0x4, offset = 0x4, fixed_abs, tag = 'smem constant byte address 0x4 - core index']
  #allocation1 [shape = 'u32[144,128]{1,0:T(1,128)}', space=vmem, size = 0x12000, scoped, tag = 'internal scratch']
  #allocation2 [shape = 'f32[8,1]{1,0:T(8,128)}', space=vmem, size = 0x1000, scoped, tag = 'scratch operand']
  #allocation3 [shape = 'f32[8,1]{1,0:T(8,128)}', space=vmem, size = 0x1000, scoped, tag = 'scratch operand']
  #allocation4 [shape = 'f32[8,1]{1,0:T(8,128)}', space=vmem, size = 0x1000, scoped, tag = 'scratch operand']
  %s0 = inlined_call_operand.vmem [shape: f32[8,128], index: 0, kind: input, shape index: {}]
  %s1 = inlined_call_operand.vmem [shape: s32[8,1], index: 1, kind: input, shape index: {}]
  %s2 = inlined_call_operand.vmem [shape: f32[8,1], index: 2, kind: output, shape index: {}]
  %s3 = sld [smem:[#allocation0]]
  $region34: #{tpu_custom_call.1} parent=0
    _
  %s5 = ssub.s32 1, %s3
  %s6 = scalar_select 0, %s5, %s3
  // Predicated region
  $region2: #{tpu_custom_call.1} parent=0 // pred_check
    _
  $region3: #{tpu_custom_call.1} parent=0 // pred_check_branch
    %8 = sbr.rel (0) target = $region5
  $region4: #{tpu_custom_call.1} parent=0 // pred_region
    _
  $region5: #{tpu_custom_call.1} parent=0 // pred_fallthru
    _
  // Predicated region
  $region6: #{tpu_custom_call.1} parent=0 // pred_check
    _
  $region7: #{tpu_custom_call.1} parent=0 // pred_check_branch
    %10 = sbr.rel (0) target = $region9
  $region8: #{tpu_custom_call.1} parent=0 // pred_region
    _
  $region9: #{tpu_custom_call.1} parent=0 // pred_fallthru
    _
  %p11 = scmp.eq.s32.totalorder 0, 0
  // Predicated region
  $region10: #{tpu_custom_call.1} parent=0 // pred_check
    %p12 = pneg %p11
  $region11: #{tpu_custom_call.1} parent=0 // pred_check_branch
    %14 = sbr.rel (%p12) target = $region13
  $region12: #{tpu_custom_call.1} parent=0 // pred_region
    %vm15 = vcmask 7168
    %16 = vst.msk [vmem:[#allocation2] sm:$0xff] %vm15, -inf
    %17 = vst.msk [vmem:[#allocation3] sm:$0xff] %vm15, 0.0
    %18 = vst.msk [vmem:[#allocation4] sm:$0xff] %vm15, 0.0
  $region13: #{tpu_custom_call.1} parent=0 // pred_fallthru
    _
  %v19 = vld [vmem:[%s0] sm:$0xff]
  %v20 = vld [vmem:[#allocation2] sm:$0xff]
  %21 = vmax.xlane.f32.xlu0 %v19
  %v22 = vpop.xlane.xlu0 %21
  %v23 = vmax.f32 %v20, %v22
  %v24 = vsub.f32 %v20, %v23
  %v25 = vmul.f32 %v24, 1.442695
  %v26 = vpow.pop %v25
  %v27 = vld [vmem:[#allocation3] sm:$0xff]
  %v28 = vmul.f32 %v26, %v27
  %30 = vset.pattern.permute.xlu0 0
  %31 = vperm.xlu0 %30, %v23
  %v32 = vpop.permute.xlu0 %31
  %v34 = vsub.f32 %v19, %v32
  %v35 = vmul.f32 %v34, 1.442695
  %v36 = vpow.pop %v35
  %37 = vadd.xlane.f32.xlu0 %v36
  %v38 = vpop.xlane.xlu0 %37
  %v39 = vadd.f32 %v28, %v38
  %vm40 = vcmask 7168
  %41 = vst.msk [vmem:[#allocation3] sm:$0xff] %vm40, %v39
  %42 = vst.msk [vmem:[#allocation2] sm:$0xff] %vm40, %v23
  %v43 = vlaneseq
  %v44 = vand.u32 %v43, 127
  %v45 = vld [vmem:[%s1] sm:$0xff]
  %s46 = smul.u32 0, 128
  %v47 = vstv %s46
  %v48 = vsub.s32 %v45, %v47
  %49 = vset.pattern.permute.xlu0 0
  %50 = vperm.xlu0 %49, %v48
  %v51 = vpop.permute.xlu0 %50
  %vm52 = vcmp.eq.s32.totalorder %v44, %v51
  %v53 = vsel %vm52, %v19, 0.0
  %54 = vadd.xlane.f32.xlu0 %v53
  %v55 = vpop.xlane.xlu0 %54
  // Predicated region
  $region14: #{tpu_custom_call.1} parent=0 // pred_check
    %p56 = pneg %p11
  $region15: #{tpu_custom_call.1} parent=0 // pred_check_branch
    %58 = sbr.rel (%p56) target = $region17
  $region16: #{tpu_custom_call.1} parent=0 // pred_region
    %vm59 = vcmp.lt.s32.totalorder %v44, 32
    %v60 = vsel %vm59, %v19, 0.0
    %v61 = vld [vmem:[#allocation4] sm:$0xff]
    %62 = vadd.xlane.f32.xlu0 %v60
    %v63 = vpop.xlane.xlu0 %62
    %v64 = vmul.f32 %v63, 0.003125
    %v65 = vadd.f32 %v61, %v64
    %v66 = vmul.f32 %v55, 0.9
    %v67 = vadd.f32 %v65, %v66
    %68 = vst.msk [vmem:[#allocation4] sm:$0xff] %vm40, %v67
  $region17: #{tpu_custom_call.1} parent=0 // pred_fallthru
    _
  %p69 = scmp.ne.s32.totalorder 0, 0
  // Predicated region
  $region18: #{tpu_custom_call.1} parent=0 // pred_check
    %p70 = pneg %p69
  $region19: #{tpu_custom_call.1} parent=0 // pred_check_branch
    %72 = sbr.rel (%p70) target = $region21
  $region20: #{tpu_custom_call.1} parent=0 // pred_region
    %v73 = vld [vmem:[#allocation4] sm:$0xff]
    %74 = vadd.xlane.f32.xlu0 %v19
    %v75 = vpop.xlane.xlu0 %74
    %v76 = vmul.f32 %v75, 0.003125
    %v77 = vadd.f32 %v73, %v76
    %v78 = vmul.f32 %v55, 0.9
    %v79 = vadd.f32 %v77, %v78
    %80 = vst.msk [vmem:[#allocation4] sm:$0xff] %vm40, %v79
  $region21: #{tpu_custom_call.1} parent=0 // pred_fallthru
    _
  // Predicated region
  $region22: #{tpu_custom_call.1} parent=0 // pred_check
    %p81 = pneg %p11
  $region23: #{tpu_custom_call.1} parent=0 // pred_check_branch
    %83 = sbr.rel (%p81) target = $region25
  $region24: #{tpu_custom_call.1} parent=0 // pred_region
    %v84 = vld [vmem:[#allocation2] sm:$0xff]
    %v85 = vld [vmem:[#allocation3] sm:$0xff]
    %v86 = vlog2.pop %v85
    %v87 = vmul.f32 %v86, 0.6931472
    %v88 = vadd.f32 %v84, %v87
    %v89 = vld [vmem:[#allocation4] sm:$0xff]
    %v90 = vsub.f32 %v88, %v89
    %91 = vst.msk [vmem:[%s2] sm:$0xff] %vm40, %v90
  $region25: #{tpu_custom_call.1} parent=0 // pred_fallthru
    _
  // Predicated region
  $region26: #{tpu_custom_call.1} parent=0 // pred_check
    _
  $region27: #{tpu_custom_call.1} parent=0 // pred_check_branch
    %93 = sbr.rel (0) target = $region29
  $region28: #{tpu_custom_call.1} parent=0 // pred_region
    _
  $region29: #{tpu_custom_call.1} parent=0 // pred_fallthru
    _
  // Predicated region
  $region30: #{tpu_custom_call.1} parent=0 // pred_check
    _
  $region31: #{tpu_custom_call.1} parent=0 // pred_check_branch
    %95 = sbr.rel (0) target = $region33
  $region32: #{tpu_custom_call.1} parent=0 // pred_region
    _
  $region33: #{tpu_custom_call.1} parent=0 // pred_fallthru
    _

</llo_original>
